<compile_context>
chip_gen: v7x
topology: tpu7x:2x2x1
jax: 0.10.0
libtpu: 0.0.40
codegen_flags: <defaults>
</compile_context>

<pallas_src>
import jax
import jax.numpy as jnp
from jax.experimental import pallas as pl
from jax.experimental.pallas import tpu as pltpu


def _bayesian_lr_kernel(x_ref, wmu_ref, sw2_ref, eps_ref, bmu_ref, sigb2_ref,
                        out_ref):
    x = x_ref[...].astype(jnp.float32)                              # (bb, F)

    # Two MXU matvecs: per-row mean and variance of the sampled logit.
    mean = jnp.dot(x, wmu_ref[...], preferred_element_type=jnp.float32)     # (bb, 1)
    var = jnp.dot(x * x, sw2_ref[...], preferred_element_type=jnp.float32)  # (bb, 1)

    std = jnp.sqrt(var + sigb2_ref[...])                            # (bb, 1)
    out_ref[...] = (mean + bmu_ref[...] + std * eps_ref[...]).astype(out_ref.dtype)


def bayesian_lr_forward(xv, W_mu, W_logvar, b_mu, b_logvar, key, *,
                        block_b=None):
    """Forward pass of BayesianLR.  xv: (B, F).  Returns (B, 1) logits."""
    B, F = xv.shape

    # Hoisted (once-per-call) parameter prep; accepts the module's (1, 1, F)
    # and (1, 1) parameter shapes.  sigma^2 = exp(logvar).
    w_mu = jnp.asarray(W_mu, jnp.float32).reshape(F, 1)
    sigma_w_sq = jnp.exp(jnp.asarray(W_logvar, jnp.float32)).reshape(F, 1)
    b_mu2 = jnp.asarray(b_mu, jnp.float32).reshape(1, 1)
    sigma_b_sq = jnp.exp(jnp.asarray(b_logvar, jnp.float32)).reshape(1, 1)

    # Per-row standard normal (local reparameterization): tiny (B, 1) stream.
    eps = jax.random.normal(key, (B, 1), dtype=jnp.float32)

    itemsize = jnp.dtype(xv.dtype).itemsize
    sublane = {4: 8, 2: 16, 1: 32}.get(itemsize, 8)

    if block_b is None:
        block_b = B
        # Cap rows per tile and aim for grid >= 2 so both v7x cores get work.
        for cand in (512, B // 2):
            if cand and B % cand == 0 and cand % sublane == 0:
                block_b = cand
                break
    block_b = int(min(block_b, B))
    if B % block_b != 0:
        raise ValueError(f"batch {B} must be divisible by block_b {block_b}")
    if block_b != B and block_b % sublane != 0:
        raise ValueError(
            f"block_b must be a multiple of {sublane} for dtype {xv.dtype}")
    grid = (B // block_b,)

    # VMEM budget: double-buffered x tile + f32 upcast / x*x intermediates;
    # capped at 32 MiB so it also fits v7x's 64 MiB physical VMEM.
    tile_bytes = block_b * F * itemsize
    vmem_limit = int(min(max(6 * tile_bytes + (1 << 20), 16 << 20), 32 << 20))

    return pl.pallas_call(
        _bayesian_lr_kernel,
        out_shape=jax.ShapeDtypeStruct((B, 1), jnp.float32),
        grid=grid,
        in_specs=[
            pl.BlockSpec((block_b, F), lambda i: (i, 0)),   # x tile (streamed)
            pl.BlockSpec((F, 1), lambda i: (0, 0)),         # W_mu (resident)
            pl.BlockSpec((F, 1), lambda i: (0, 0)),         # sigma_w^2
            pl.BlockSpec((block_b, 1), lambda i: (i, 0)),   # per-row eps
            pl.BlockSpec((1, 1), lambda i: (0, 0)),         # b_mu
            pl.BlockSpec((1, 1), lambda i: (0, 0)),         # sigma_b^2
        ],
        out_specs=pl.BlockSpec((block_b, 1), lambda i: (i, 0)),
        compiler_params=pltpu.CompilerParams(
            dimension_semantics=("parallel",),
            vmem_limit_bytes=vmem_limit,
        ),
    )(xv, w_mu, sigma_w_sq, eps, b_mu2, sigma_b_sq)


def _reference_forward(xv, W_mu, W_logvar, b_mu, b_logvar, key):
    """Pure-JAX reference using the identical eps draw (exact comparison)."""
    B, F = xv.shape
    x = jnp.asarray(xv, jnp.float32)
    w_mu = jnp.asarray(W_mu, jnp.float32).reshape(F, 1)
    sw2 = jnp.exp(jnp.asarray(W_logvar, jnp.float32)).reshape(F, 1)
    bm = jnp.asarray(b_mu, jnp.float32).reshape(1, 1)
    sb2 = jnp.exp(jnp.asarray(b_logvar, jnp.float32)).reshape(1, 1)
    eps = jax.random.normal(key, (B, 1), dtype=jnp.float32)
    mean = x @ w_mu + bm                              # (B, 1)
    var = (x * x) @ sw2 + sb2                         # (B, 1)
    return mean + jnp.sqrt(var) * eps


if __name__ == "__main__":
    B, F = 256, 128          # small, multi-block: default block_b -> 128, grid = 2

    key = jax.random.PRNGKey(0)
    k_x, k_wmu, k_wlv, k_bmu, k_blv, k_eps = jax.random.split(key, 6)

    # Parameter shapes mirror BayesianLR.__init__.
    W_mu = jax.random.normal(k_wmu, (1, 1, F), dtype=jnp.float32)
    W_logvar = jax.random.normal(k_wlv, (1, 1, F), dtype=jnp.float32)
    b_mu = jax.random.normal(k_bmu, (1, 1), dtype=jnp.float32)
    b_logvar = jax.random.normal(k_blv, (1, 1), dtype=jnp.float32)
    xv = jax.random.normal(k_x, (B, F), dtype=jnp.float32)

    # --- Exact check: kernel vs pure-JAX reference sharing the same eps -----
    logit = bayesian_lr_forward(xv, W_mu, W_logvar, b_mu, b_logvar, k_eps)
    logit = jax.block_until_ready(logit)
    ref = _reference_forward(xv, W_mu, W_logvar, b_mu, b_logvar, k_eps)

    assert logit.shape == (B, 1)
    assert bool(jnp.all(jnp.isfinite(logit)))
    assert jnp.allclose(logit, ref, rtol=1e-4, atol=1e-4)

    # --- Deterministic check: logvar -> -inf gives the noise-free mean ------
    neg_w = jnp.full_like(W_logvar, -jnp.inf)
    neg_b = jnp.full_like(b_logvar, -jnp.inf)
    out_det = bayesian_lr_forward(xv, W_mu, neg_w, b_mu, neg_b, k_eps)
    out_det = jax.block_until_ready(out_det)
    mean_ref = (xv @ jnp.asarray(W_mu, jnp.float32).reshape(F, 1)
                + jnp.asarray(b_mu, jnp.float32).reshape(1, 1))
    assert jnp.allclose(out_det, mean_ref, rtol=1e-4, atol=1e-4)

    # TODO(synk): training-only pieces (BCEWithLogitsLoss, KL divergence, Adam
    # step) are not part of the forward hot path and are omitted.
    print("KERNEL_OK")
</pallas_src>

<mosaic_0001>
module attributes {stable_mosaic.version = 11 : i64} {
  func.func @_bayesian_lr_kernel(%arg0: i32, %arg1: memref<128x128xf32, #tpu.memory_space<vmem>>, %arg2: memref<128x1xf32, #tpu.memory_space<vmem>>, %arg3: memref<128x1xf32, #tpu.memory_space<vmem>>, %arg4: memref<128x1xf32, #tpu.memory_space<vmem>>, %arg5: memref<1x1xf32, #tpu.memory_space<vmem>>, %arg6: memref<1x1xf32, #tpu.memory_space<vmem>>, %arg7: memref<128x1xf32, #tpu.memory_space<vmem>>) attributes {dimension_semantics = [#tpu.dimension_semantics<parallel>], iteration_bounds = array<i64: 2>, scalar_prefetch = 0 : i64, scratch_operands = 0 : i64, tpu.core_type = #tpu.core_type<tc>, window_params = [{transform_indices = @transform_0, window_bounds = array<i64: 128, 128>}, {pipeline_mode = #tpu.pipeline_mode<synchronous>, transform_indices = @transform_1, window_bounds = array<i64: 128, 1>}, {pipeline_mode = #tpu.pipeline_mode<synchronous>, transform_indices = @transform_2, window_bounds = array<i64: 128, 1>}, {transform_indices = @transform_3, window_bounds = array<i64: 128, 1>}, {pipeline_mode = #tpu.pipeline_mode<synchronous>, transform_indices = @transform_4, window_bounds = array<i64: 1, 1>}, {pipeline_mode = #tpu.pipeline_mode<synchronous>, transform_indices = @transform_5, window_bounds = array<i64: 1, 1>}, {transform_indices = @transform_6, window_bounds = array<i64: 128, 1>}]} {
    %c0 = arith.constant 0 : index
    %c0_0 = arith.constant 0 : index
    %0 = vector.load %arg1[%c0, %c0_0] : memref<128x128xf32, #tpu.memory_space<vmem>>, vector<128x128xf32>
    %c0_1 = arith.constant 0 : index
    %c0_2 = arith.constant 0 : index
    %1 = vector.load %arg2[%c0_1, %c0_2] : memref<128x1xf32, #tpu.memory_space<vmem>>, vector<128x1xf32>
    %cst = arith.constant dense<0.000000e+00> : vector<128x1xf32>
    %2 = tpu.matmul %0, %1, %cst {dimension_numbers = #tpu.dot_dimension_numbers<[1], [0], [0], [1], [0, 0, 1, 1], [], []>} : vector<128x128xf32>, vector<128x1xf32>, vector<128x1xf32> -> vector<128x1xf32>
    %3 = arith.mulf %0, %0 : vector<128x128xf32>
    %c0_3 = arith.constant 0 : index
    %c0_4 = arith.constant 0 : index
    %4 = vector.load %arg3[%c0_3, %c0_4] : memref<128x1xf32, #tpu.memory_space<vmem>>, vector<128x1xf32>
    %cst_5 = arith.constant dense<0.000000e+00> : vector<128x1xf32>
    %5 = tpu.matmul %3, %4, %cst_5 {dimension_numbers = #tpu.dot_dimension_numbers<[1], [0], [0], [1], [0, 0, 1, 1], [], []>} : vector<128x128xf32>, vector<128x1xf32>, vector<128x1xf32> -> vector<128x1xf32>
    %c0_6 = arith.constant 0 : index
    %c0_7 = arith.constant 0 : index
    %6 = vector.load %arg6[%c0_6, %c0_7] : memref<1x1xf32, #tpu.memory_space<vmem>>, vector<1x1xf32>
    %7 = vector.broadcast %6 : vector<1x1xf32> to vector<128x1xf32>
    %8 = arith.addf %5, %7 : vector<128x1xf32>
    %9 = math.sqrt %8 : vector<128x1xf32>
    %c0_8 = arith.constant 0 : index
    %c0_9 = arith.constant 0 : index
    %10 = vector.load %arg5[%c0_8, %c0_9] : memref<1x1xf32, #tpu.memory_space<vmem>>, vector<1x1xf32>
    %11 = vector.broadcast %10 : vector<1x1xf32> to vector<128x1xf32>
    %12 = arith.addf %2, %11 : vector<128x1xf32>
    %c0_10 = arith.constant 0 : index
    %c0_11 = arith.constant 0 : index
    %13 = vector.load %arg4[%c0_10, %c0_11] : memref<128x1xf32, #tpu.memory_space<vmem>>, vector<128x1xf32>
    %14 = arith.mulf %9, %13 : vector<128x1xf32>
    %15 = arith.addf %12, %14 : vector<128x1xf32>
    %c0_12 = arith.constant 0 : index
    %c0_13 = arith.constant 0 : index
    %16 = vector.load %arg7[%c0_12, %c0_13] : memref<128x1xf32, #tpu.memory_space<vmem>>, vector<128x1xf32>
    tpu.vector_store %arg7[%c0_12, %c0_13], %15 {strides = array<i32>} : memref<128x1xf32, #tpu.memory_space<vmem>>, vector<128x1xf32>,
    return
  }
  func.func @transform_0(%arg0: i32) -> (i32, i32) {
    %c0_i32 = arith.constant 0 : i32
    %c0_i32_0 = arith.constant 0 : i32
    return %arg0, %c0_i32 : i32, i32
  }
  func.func @transform_1(%arg0: i32) -> (i32, i32) {
    %c0_i32 = arith.constant 0 : i32
    %c0_i32_0 = arith.constant 0 : i32
    %c0_i32_1 = arith.constant 0 : i32
    return %c0_i32, %c0_i32_0 : i32, i32
  }
  func.func @transform_2(%arg0: i32) -> (i32, i32) {
    %c0_i32 = arith.constant 0 : i32
    %c0_i32_0 = arith.constant 0 : i32
    %c0_i32_1 = arith.constant 0 : i32
    return %c0_i32, %c0_i32_0 : i32, i32
  }
  func.func @transform_3(%arg0: i32) -> (i32, i32) {
    %c0_i32 = arith.constant 0 : i32
    %c0_i32_0 = arith.constant 0 : i32
    return %arg0, %c0_i32 : i32, i32
  }
  func.func @transform_4(%arg0: i32) -> (i32, i32) {
    %c0_i32 = arith.constant 0 : i32
    %c0_i32_0 = arith.constant 0 : i32
    %c0_i32_1 = arith.constant 0 : i32
    return %c0_i32, %c0_i32_0 : i32, i32
  }
  func.func @transform_5(%arg0: i32) -> (i32, i32) {
    %c0_i32 = arith.constant 0 : i32
    %c0_i32_0 = arith.constant 0 : i32
    %c0_i32_1 = arith.constant 0 : i32
    return %c0_i32, %c0_i32_0 : i32, i32
  }
  func.func @transform_6(%arg0: i32) -> (i32, i32) {
    %c0_i32 = arith.constant 0 : i32
    %c0_i32_0 = arith.constant 0 : i32
    return %arg0, %c0_i32 : i32, i32
  }
}

</mosaic_0001>

<llo_original>
// kernel: tpu_custom_call.1
$region0: #{tpu_custom_call.1}
  #allocation0 [shape = 'u32[]', space=smem, size = 0x4, offset = 0x4, fixed_abs, tag = 'smem constant byte address 0x4 - core index']
  #allocation1 [shape = 'u32[144,128]{1,0:T(1,128)}', space=vmem, size = 0x12000, scoped, tag = 'internal scratch']
  #allocation2 [shape = 'f32[1,1]{1,0:T(1,128)S(1)}', space=vmem, size = 0x200, scoped, tag = 'scoped memory for tpu_custom_call.1']
  #allocation3 [shape = 'f32[1,1]{1,0:T(1,128)S(1)}', space=vmem, size = 0x200, scoped, tag = 'scoped memory for tpu_custom_call.1']
  %s0 = inlined_call_operand.vmem [shape: f32[256,128], index: 0, kind: input, shape index: {}]
  %s1 = inlined_call_operand.vmem [shape: f32[128,1], index: 1, kind: input, shape index: {}]
  %s2 = inlined_call_operand.vmem [shape: f32[128,1], index: 2, kind: input, shape index: {}]
  %s3 = inlined_call_operand.vmem [shape: f32[256,1], index: 3, kind: input, shape index: {}]
  %s4 = inlined_call_operand.<no memory space> [shape: f32[1,1], index: 4, kind: input, shape index: {}]
  %s5 = inlined_call_operand.<no memory space> [shape: f32[1,1], index: 5, kind: input, shape index: {}]
  %s6 = inlined_call_operand.vmem [shape: f32[256,1], index: 6, kind: output, shape index: {}]
  %s7 = sld [smem:[#allocation0]]
  $region57: #{tpu_custom_call.1} parent=0
    _
  %s9 = ssub.s32 1, %s7
  %s10 = scalar_select 0, %s9, %s7
  %v11 = vstv %s4
  %12 = vst [vmem:[#allocation2] sm:$0x1] %v11
  %v13 = vstv %s5
  %14 = vst [vmem:[#allocation3] sm:$0x1] %v13
  loop: start=0, step=1, limit=4
  $region2: #{tpu_custom_call.1} parent=0 // loop_pre_header
    _
  $region3: #{tpu_custom_call.1} parent=0 // loop_header
    %s16 = sphi 0, %s20
    %p17 = scmp.ge.s32.totalorder %s16, 4
    %s26 = sphi 0, %s28
    %s29 = sphi 0, %s26
    %s30 = sphi 0, %s29
    %s46 = sphi 0, %s30
    %s50 = sphi 0, %s50
    %s52 = sphi 0, %s50
    %s53 = sphi 0, %s52
    %s67 = sphi 0, %s53
    %s71 = sphi 0, %s71
    %s73 = sphi 0, %s71
    %s74 = sphi 0, %s73
    %s88 = sphi 0, %s74
    %s94 = sphi 0, %s96
    %s97 = sphi 0, %s94
    %s98 = sphi 0, %s97
    %s114 = sphi 0, %s98
    %s118 = sphi 0, %s118
    %s120 = sphi 0, %s118
    %s121 = sphi 0, %s120
    %s135 = sphi 0, %s121
    %s139 = sphi 0, %s139
    %s141 = sphi 0, %s139
    %s142 = sphi 0, %s141
    %s156 = sphi 0, %s142
    %s162 = sphi 0, %s164
    %s165 = sphi 0, %s162
    %s166 = sphi 0, %s165
    %s182 = sphi 0, %s166
  $region4: #{tpu_custom_call.1} parent=0 // loop_header_branch
    %19 = sbr.rel (%p17) target = $region8
  $region5: #{tpu_custom_call.1} parent=0 // loop_body
    %s21 = ssub.s32 %s16, 1
    %s22 = ssub.s32 %s16, 2
    %s23 = sadd.s32 %s16, 1
    %s24 = ssub.s32 %s16, %s23
    %p25 = scmp.eq.s32.totalorder %s24, 0
    %s27 = sadd.s32 %s26, 1
    %s28 = scalar_select %p25, %s26, %s27
    %p31 = pneg %p25
    %p32 = scmp.eq.s32.totalorder %s16, 1
    %p33 = por %p31, %p32
    %p34 = scmp.ne.s32.totalorder %s26, %s29
    %p35 = scmp.eq.s32.totalorder %s16, 0
    %p36 = por %p34, %p35
    %p37 = scmp.ne.s32.totalorder %s26, %s29
    %p38 = scmp.eq.s32.totalorder %s21, 1
    %p39 = por %p37, %p38
    %p40 = scmp.ne.s32.totalorder %s29, %s30
    %p41 = scmp.eq.s32.totalorder %s21, 0
    %p42 = por %p40, %p41
    %p43 = scmp.ne.s32.totalorder %s29, %s30
    %p44 = scmp.eq.s32.totalorder %s22, 1
    %p45 = por %p43, %p44
    %p47 = scmp.ne.s32.totalorder %s30, %s46
    %p48 = scmp.eq.s32.totalorder %s22, 0
    %p49 = por %p47, %p48
    %s51 = sadd.s32 %s50, 1
    %p54 = scmp.eq.s32.totalorder %s16, 1
    %p55 = scmp.ne.s32.totalorder %s50, %s52
    %p56 = scmp.eq.s32.totalorder %s16, 0
    %p57 = por %p55, %p56
    %p58 = scmp.ne.s32.totalorder %s50, %s52
    %p59 = scmp.eq.s32.totalorder %s21, 1
    %p60 = por %p58, %p59
    %p61 = scmp.ne.s32.totalorder %s52, %s53
    %p62 = scmp.eq.s32.totalorder %s21, 0
    %p63 = por %p61, %p62
    %p64 = scmp.ne.s32.totalorder %s52, %s53
    %p65 = scmp.eq.s32.totalorder %s22, 1
    %p66 = por %p64, %p65
    %p68 = scmp.ne.s32.totalorder %s53, %s67
    %p69 = scmp.eq.s32.totalorder %s22, 0
    %p70 = por %p68, %p69
    %s72 = sadd.s32 %s71, 1
    %p75 = scmp.eq.s32.totalorder %s16, 1
    %p76 = scmp.ne.s32.totalorder %s71, %s73
    %p77 = scmp.eq.s32.totalorder %s16, 0
    %p78 = por %p76, %p77
    %p79 = scmp.ne.s32.totalorder %s71, %s73
    %p80 = scmp.eq.s32.totalorder %s21, 1
    %p81 = por %p79, %p80
    %p82 = scmp.ne.s32.totalorder %s73, %s74
    %p83 = scmp.eq.s32.totalorder %s21, 0
    %p84 = por %p82, %p83
    %p85 = scmp.ne.s32.totalorder %s73, %s74
    %p86 = scmp.eq.s32.totalorder %s22, 1
    %p87 = por %p85, %p86
    %p89 = scmp.ne.s32.totalorder %s74, %s88
    %p90 = scmp.eq.s32.totalorder %s22, 0
    %p91 = por %p89, %p90
    %s92 = ssub.s32 %s16, %s23
    %p93 = scmp.eq.s32.totalorder %s92, 0
    %s95 = sadd.s32 %s94, 1
    %s96 = scalar_select %p93, %s94, %s95
    %p99 = pneg %p93
    %p100 = scmp.eq.s32.totalorder %s16, 1
    %p101 = por %p99, %p100
    %p102 = scmp.ne.s32.totalorder %s94, %s97
    %p103 = scmp.eq.s32.totalorder %s16, 0
    %p104 = por %p102, %p103
    %p105 = scmp.ne.s32.totalorder %s94, %s97
    %p106 = scmp.eq.s32.totalorder %s21, 1
    %p107 = por %p105, %p106
    %p108 = scmp.ne.s32.totalorder %s97, %s98
    %p109 = scmp.eq.s32.totalorder %s21, 0
    %p110 = por %p108, %p109
    %p111 = scmp.ne.s32.totalorder %s97, %s98
    %p112 = scmp.eq.s32.totalorder %s22, 1
    %p113 = por %p111, %p112
    %p115 = scmp.ne.s32.totalorder %s98, %s114
    %p116 = scmp.eq.s32.totalorder %s22, 0
    %p117 = por %p115, %p116
    %s119 = sadd.s32 %s118, 1
    %p122 = scmp.eq.s32.totalorder %s16, 1
    %p123 = scmp.ne.s32.totalorder %s118, %s120
    %p124 = scmp.eq.s32.totalorder %s16, 0
    %p125 = por %p123, %p124
    %p126 = scmp.ne.s32.totalorder %s118, %s120
    %p127 = scmp.eq.s32.totalorder %s21, 1
    %p128 = por %p126, %p127
    %p129 = scmp.ne.s32.totalorder %s120, %s121
    %p130 = scmp.eq.s32.totalorder %s21, 0
    %p131 = por %p129, %p130
    %p132 = scmp.ne.s32.totalorder %s120, %s121
    %p133 = scmp.eq.s32.totalorder %s22, 1
    %p134 = por %p132, %p133
    %p136 = scmp.ne.s32.totalorder %s121, %s135
    %p137 = scmp.eq.s32.totalorder %s22, 0
    %p138 = por %p136, %p137
    %s140 = sadd.s32 %s139, 1
    %p143 = scmp.eq.s32.totalorder %s16, 1
    %p144 = scmp.ne.s32.totalorder %s139, %s141
    %p145 = scmp.eq.s32.totalorder %s16, 0
    %p146 = por %p144, %p145
    %p147 = scmp.ne.s32.totalorder %s139, %s141
    %p148 = scmp.eq.s32.totalorder %s21, 1
    %p149 = por %p147, %p148
    %p150 = scmp.ne.s32.totalorder %s141, %s142
    %p151 = scmp.eq.s32.totalorder %s21, 0
    %p152 = por %p150, %p151
    %p153 = scmp.ne.s32.totalorder %s141, %s142
    %p154 = scmp.eq.s32.totalorder %s22, 1
    %p155 = por %p153, %p154
    %p157 = scmp.ne.s32.totalorder %s142, %s156
    %p158 = scmp.eq.s32.totalorder %s22, 0
    %p159 = por %p157, %p158
    %s160 = ssub.s32 %s16, %s23
    %p161 = scmp.eq.s32.totalorder %s160, 0
    %s163 = sadd.s32 %s162, 1
    %s164 = scalar_select %p161, %s162, %s163
    %p167 = pneg %p161
    %p168 = scmp.eq.s32.totalorder %s16, 1
    %p169 = por %p167, %p168
    %p170 = scmp.ne.s32.totalorder %s162, %s165
    %p171 = scmp.eq.s32.totalorder %s16, 0
    %p172 = por %p170, %p171
    %p173 = scmp.ne.s32.totalorder %s162, %s165
    %p174 = scmp.eq.s32.totalorder %s21, 1
    %p175 = por %p173, %p174
    %p176 = scmp.ne.s32.totalorder %s165, %s166
    %p177 = scmp.eq.s32.totalorder %s21, 0
    %p178 = por %p176, %p177
    %p179 = scmp.ne.s32.totalorder %s165, %s166
    %p180 = scmp.eq.s32.totalorder %s22, 1
    %p181 = por %p179, %p180
    %p183 = scmp.ne.s32.totalorder %s166, %s182
    %p184 = scmp.eq.s32.totalorder %s22, 0
    %p185 = por %p183, %p184
    %p186 = scmp.le.s32.totalorder 1, %s16
    %p187 = scmp.lt.s32.totalorder %s16, 3
    %p188 = pnand %p186, %p187
    %p189 = pneg %p188
    // Predicated region
    $region9: #{tpu_custom_call.1} parent=5 // pred_check
      _
    $region10: #{tpu_custom_call.1} parent=5 // pred_check_branch
      %191 = sbr.rel (%p188) target = $region12
    $region11: #{tpu_custom_call.1} parent=5 // pred_region
      %s192 = ssub.s32 %s16, 1
      // Predicated region
      $region13: #{tpu_custom_call.1} parent=11 // pred_check
        %p193 = pneg %p63
      $region14: #{tpu_custom_call.1} parent=11 // pred_check_branch
        %195 = sbr.rel (%p193) target = $region16
      $region15: #{tpu_custom_call.1} parent=11 // pred_region
        _
      $region16: #{tpu_custom_call.1} parent=11 // pred_fallthru
        _
      // Predicated region
      $region17: #{tpu_custom_call.1} parent=11 // pred_check
        %p196 = pneg %p84
      $region18: #{tpu_custom_call.1} parent=11 // pred_check_branch
        %198 = sbr.rel (%p196) target = $region20
      $region19: #{tpu_custom_call.1} parent=11 // pred_region
        _
      $region20: #{tpu_custom_call.1} parent=11 // pred_fallthru
        _
      // Predicated region
      $region21: #{tpu_custom_call.1} parent=11 // pred_check
        %p199 = pneg %p131
      $region22: #{tpu_custom_call.1} parent=11 // pred_check_branch
        %201 = sbr.rel (%p199) target = $region24
      $region23: #{tpu_custom_call.1} parent=11 // pred_region
        _
      $region24: #{tpu_custom_call.1} parent=11 // pred_fallthru
        _
      // Predicated region
      $region25: #{tpu_custom_call.1} parent=11 // pred_check
        %p202 = pneg %p152
      $region26: #{tpu_custom_call.1} parent=11 // pred_check_branch
        %204 = sbr.rel (%p202) target = $region28
      $region27: #{tpu_custom_call.1} parent=11 // pred_region
        _
      $region28: #{tpu_custom_call.1} parent=11 // pred_fallthru
        _
    $region12: #{tpu_custom_call.1} parent=5 // pred_fallthru
      _
    %p205 = scmp.lt.s32.totalorder %s16, 2
    // Predicated region
    $region29: #{tpu_custom_call.1} parent=5 // pred_check
      %p206 = pneg %p205
    $region30: #{tpu_custom_call.1} parent=5 // pred_check_branch
      %208 = sbr.rel (%p206) target = $region32
    $region31: #{tpu_custom_call.1} parent=5 // pred_region
      // Predicated region
      $region33: #{tpu_custom_call.1} parent=31 // pred_check
        %p209 = pneg %p36
      $region34: #{tpu_custom_call.1} parent=31 // pred_check_branch
        %211 = sbr.rel (%p209) target = $region36
      $region35: #{tpu_custom_call.1} parent=31 // pred_region
        %s212 = smul.u32 16, %s16
        %p213 = scmp.lt.s32.totalorder %s212, 31
        %s214 = scalar_select %p213, %s212, 31
        %s215 = smul.addr %s214, 8
        %s216 = scalar_lea.vmem %s0, %s215
        %s217 = smul.u32 16, %s16
      $region36: #{tpu_custom_call.1} parent=31 // pred_fallthru
        _
      // Predicated region
      $region37: #{tpu_custom_call.1} parent=31 // pred_check
        %p218 = pneg %p104
      $region38: #{tpu_custom_call.1} parent=31 // pred_check_branch
        %220 = sbr.rel (%p218) target = $region40
      $region39: #{tpu_custom_call.1} parent=31 // pred_region
        %s221 = smul.u32 16, %s16
        %p222 = scmp.lt.s32.totalorder %s221, 31
        %s223 = scalar_select %p222, %s221, 31
        %s224 = smul.addr %s223, 8
        %s225 = scalar_lea.vmem %s3, %s224
        %s226 = smul.u32 16, %s16
      $region40: #{tpu_custom_call.1} parent=31 // pred_fallthru
        _
    $region32: #{tpu_custom_call.1} parent=5 // pred_fallthru
      _
    %p227 = scmp.le.s32.totalorder 1, %s16
    %p228 = scmp.lt.s32.totalorder %s16, 3
    %p229 = pnand %p227, %p228
    %p230 = pneg %p229
    // Predicated region
    $region41: #{tpu_custom_call.1} parent=5 // pred_check
      _
    $region42: #{tpu_custom_call.1} parent=5 // pred_check_branch
      %232 = sbr.rel (%p229) target = $region44
    $region43: #{tpu_custom_call.1} parent=5 // pred_region
      %s233 = ssub.s32 %s16, 1
      %s234 = smul.u32 16, %s21
      %p235 = scmp.lt.s32.totalorder %s234, 31
      %s236 = scalar_select %p235, %s234, 31
      %s237 = smul.addr %s236, 8
      %s238 = scalar_lea.vmem %s0, %s237
      %p239 = pneg %p42
      %p240 = pneg %p39
      %p241 = pneg %p63
      %p242 = pneg %p60
      %p243 = pneg %p84
      %p244 = pneg %p81
      %s245 = smul.u32 16, %s21
      %p246 = scmp.lt.s32.totalorder %s245, 31
      %s247 = scalar_select %p246, %s245, 31
      %s248 = smul.addr %s247, 8
      %s249 = scalar_lea.vmem %s3, %s248
      %p250 = pneg %p110
      %p251 = pneg %p107
      %p252 = pneg %p131
      %p253 = pneg %p128
      %p254 = pneg %p152
      %p255 = pneg %p149
      %p256 = pneg %p178
      %p257 = pneg %p175
      %s258 = smul.u32 16, %s21
      %p259 = scmp.lt.s32.totalorder %s258, 31
      %s260 = scalar_select %p259, %s258, 31
      %s261 = smul.addr %s260, 8
      %s262 = scalar_lea.vmem %s6, %s261
      %s263 = smul.u32 16, %s21
      %p264 = scmp.lt.s32.totalorder %s263, 31
      %s265 = scalar_select %p264, %s263, 31
      %s266 = smul.addr %s265, 8
      %s267 = scalar_lea.vmem %s0, %s266
      %s268 = smul.u32 16, %s21
      %s269 = smul.u32 16, %s21
      %p270 = scmp.lt.s32.totalorder %s269, 31
      %s271 = scalar_select %p270, %s269, 31
      %s272 = smul.addr %s271, 8
      %s273 = scalar_lea.vmem %s3, %s272
      %s274 = smul.u32 16, %s21
      %s275 = smul.u32 16, %s21
      %p276 = scmp.lt.s32.totalorder %s275, 31
      %s277 = scalar_select %p276, %s275, 31
      %s278 = smul.addr %s277, 8
      %s279 = scalar_lea.vmem %s6, %s278
      %s280 = smul.u32 16, %s21
      %v281 = vld [vmem:[%s267] sm:$0xff]
      %v282 = vld [vmem:[%s267 + $0x8] sm:$0xff]
      %v283 = vld [vmem:[%s267 + $0x10] sm:$0xff]
      %v284 = vld [vmem:[%s267 + $0x18] sm:$0xff]
      %v285 = vld [vmem:[%s267 + $0x20] sm:$0xff]
      %v286 = vld [vmem:[%s267 + $0x28] sm:$0xff]
      %v287 = vld [vmem:[%s267 + $0x30] sm:$0xff]
      %v288 = vld [vmem:[%s267 + $0x38] sm:$0xff]
      %v289 = vld [vmem:[%s267 + $0x40] sm:$0xff]
      %v290 = vld [vmem:[%s267 + $0x48] sm:$0xff]
      %v291 = vld [vmem:[%s267 + $0x50] sm:$0xff]
      %v292 = vld [vmem:[%s267 + $0x58] sm:$0xff]
      %v293 = vld [vmem:[%s267 + $0x60] sm:$0xff]
      %v294 = vld [vmem:[%s267 + $0x68] sm:$0xff]
      %v295 = vld [vmem:[%s267 + $0x70] sm:$0xff]
      %v296 = vld [vmem:[%s267 + $0x78] sm:$0xff]
      %v297 = vld [vmem:[%s1] sm:$0xff]
      %v298 = vld [vmem:[%s1 + $0x8] sm:$0xff]
      %v299 = vld [vmem:[%s1 + $0x10] sm:$0xff]
      %v300 = vld [vmem:[%s1 + $0x18] sm:$0xff]
      %v301 = vld [vmem:[%s1 + $0x20] sm:$0xff]
      %v302 = vld [vmem:[%s1 + $0x28] sm:$0xff]
      %v303 = vld [vmem:[%s1 + $0x30] sm:$0xff]
      %v304 = vld [vmem:[%s1 + $0x38] sm:$0xff]
      %v305 = vld [vmem:[%s1 + $0x40] sm:$0xff]
      %v306 = vld [vmem:[%s1 + $0x48] sm:$0xff]
      %v307 = vld [vmem:[%s1 + $0x50] sm:$0xff]
      %v308 = vld [vmem:[%s1 + $0x58] sm:$0xff]
      %v309 = vld [vmem:[%s1 + $0x60] sm:$0xff]
      %v310 = vld [vmem:[%s1 + $0x68] sm:$0xff]
      %v311 = vld [vmem:[%s1 + $0x70] sm:$0xff]
      %v312 = vld [vmem:[%s1 + $0x78] sm:$0xff]
      %v313 = vmul.f32 %v281, %v281
      %v314 = vmul.f32 %v282, %v282
      %v315 = vmul.f32 %v283, %v283
      %v316 = vmul.f32 %v284, %v284
      %v317 = vmul.f32 %v285, %v285
      %v318 = vmul.f32 %v286, %v286
      %v319 = vmul.f32 %v287, %v287
      %v320 = vmul.f32 %v288, %v288
      %v321 = vmul.f32 %v289, %v289
      %v322 = vmul.f32 %v290, %v290
      %v323 = vmul.f32 %v291, %v291
      %v324 = vmul.f32 %v292, %v292
      %v325 = vmul.f32 %v293, %v293
      %v326 = vmul.f32 %v294, %v294
      %v327 = vmul.f32 %v295, %v295
      %v328 = vmul.f32 %v296, %v296
      %v329 = vld [vmem:[%s2] sm:$0xff]
      %v330 = vld [vmem:[%s2 + $0x8] sm:$0xff]
      %v331 = vld [vmem:[%s2 + $0x10] sm:$0xff]
      %v332 = vld [vmem:[%s2 + $0x18] sm:$0xff]
      %v333 = vld [vmem:[%s2 + $0x20] sm:$0xff]
      %v334 = vld [vmem:[%s2 + $0x28] sm:$0xff]
      %v335 = vld [vmem:[%s2 + $0x30] sm:$0xff]
      %v336 = vld [vmem:[%s2 + $0x38] sm:$0xff]
      %v337 = vld [vmem:[%s2 + $0x40] sm:$0xff]
      %v338 = vld [vmem:[%s2 + $0x48] sm:$0xff]
      %v339 = vld [vmem:[%s2 + $0x50] sm:$0xff]
      %v340 = vld [vmem:[%s2 + $0x58] sm:$0xff]
      %v341 = vld [vmem:[%s2 + $0x60] sm:$0xff]
      %v342 = vld [vmem:[%s2 + $0x68] sm:$0xff]
      %v343 = vld [vmem:[%s2 + $0x70] sm:$0xff]
      %v344 = vld [vmem:[%s2 + $0x78] sm:$0xff]
      %v345 = vld [vmem:[#allocation3] sm:$0x1]
      %v347 = vlaneseq
      %v348 = vshrl.u32 %v347, 7
      %v349 = vsub.s32 0, %v348
      %v350 = vrot.slane %v345, %v349
      %352 = vmatprep.subr.mxu0 0.0
      %353 = vmatpush1.msra.mxu0 %v329
      %354 = vmatprep.subr.mxu0 0.0
      %355 = vmatpush1.msra.mxu0 %v330
      %356 = vmatprep.subr.mxu0 0.0
      %357 = vmatpush1.msra.mxu0 %v331
      %358 = vmatprep.subr.mxu0 0.0
      %359 = vmatpush1.msra.mxu0 %v332
      %360 = vmatprep.subr.mxu0 0.0
      %361 = vmatpush1.msra.mxu0 %v333
      %362 = vmatprep.subr.mxu0 0.0
      %363 = vmatpush1.msra.mxu0 %v334
      %364 = vmatprep.subr.mxu0 0.0
      %365 = vmatpush1.msra.mxu0 %v335
      %366 = vmatprep.subr.mxu0 0.0
      %367 = vmatpush1.msra.mxu0 %v336
      %368 = vmatprep.subr.mxu0 0.0
      %369 = vmatpush1.msra.mxu0 %v337
      %370 = vmatprep.subr.mxu0 0.0
      %371 = vmatpush1.msra.mxu0 %v338
      %372 = vmatprep.subr.mxu0 0.0
      %373 = vmatpush1.msra.mxu0 %v339
      %374 = vmatprep.subr.mxu0 0.0
      %375 = vmatpush1.msra.mxu0 %v340
      %376 = vmatprep.subr.mxu0 0.0
      %377 = vmatpush1.msra.mxu0 %v341
      %378 = vmatprep.subr.mxu0 0.0
      %379 = vmatpush1.msra.mxu0 %v342
      %380 = vmatprep.subr.mxu0 0.0
      %381 = vmatpush1.msra.mxu0 %v343
      %382 = vmatprep.subr.mxu0 0.0
      %383 = vmatpush1.msra.mxu0 %v344
      %384 = vmatprep.subr.mxu0 0.0
      %385 = vmatpush1.msra.mxu0 0.0
      %386 = vmatprep.subr.mxu0 0.0
      %387 = vmatpush1.msra.mxu0 0.0
      %388 = vmatprep.subr.mxu0 0.0
      %389 = vmatpush1.msra.mxu0 0.0
      %390 = vmatprep.subr.mxu0 0.0
      %391 = vmatpush1.msra.mxu0 0.0
      %392 = vmatprep.subr.mxu0 0.0
      %393 = vmatpush1.msra.mxu0 0.0
      %394 = vmatprep.subr.mxu0 0.0
      %395 = vmatpush1.msra.mxu0 0.0
      %396 = vmatprep.subr.mxu0 0.0
      %397 = vmatpush1.msra.mxu0 0.0
      %398 = vmatprep.subr.mxu0 0.0
      %399 = vmatpush1.msra.mxu0 0.0
      %400 = vmatprep.subr.mxu0 0.0
      %401 = vmatpush1.msra.mxu0 0.0
      %402 = vmatprep.subr.mxu0 0.0
      %403 = vmatpush1.msra.mxu0 0.0
      %404 = vmatprep.subr.mxu0 0.0
      %405 = vmatpush1.msra.mxu0 0.0
      %406 = vmatprep.subr.mxu0 0.0
      %407 = vmatpush1.msra.mxu0 0.0
      %408 = vmatprep.subr.mxu0 0.0
      %409 = vmatpush1.msra.mxu0 0.0
      %410 = vmatprep.subr.mxu0 0.0
      %411 = vmatpush1.msra.mxu0 0.0
      %412 = vmatprep.subr.mxu0 0.0
      %413 = vmatpush1.msra.mxu0 0.0
      %414 = vmatprep.subr.mxu0 0.0
      %415 = vmatpush1.msra.mxu0 0.0
      %416 = vmatprep.mubr.f32.mxu0 0.0
      %417 = vmatmul.mubr.f32.gmra.mrb[0].mxu0 %v313
      %v418 = vpop.f32.mrb[0].mxu0
      %v419 = vadd.f32 %v350, %v418
      %v420 = vpop.f32.mrb[0].mxu0
      %421 = vmatprep.mubr.f32.mxu0 0.0
      %422 = vmatmul.mubr.f32.gmra.mrb[0].mxu0 %v314
      %v423 = vpop.f32.mrb[0].mxu0
      %v424 = vadd.f32 %v350, %v423
      %v425 = vpop.f32.mrb[0].mxu0
      %426 = vmatprep.mubr.f32.mxu0 0.0
      %427 = vmatmul.mubr.f32.gmra.mrb[0].mxu0 %v315
      %v428 = vpop.f32.mrb[0].mxu0
      %v429 = vadd.f32 %v350, %v428
      %v430 = vpop.f32.mrb[0].mxu0
      %431 = vmatprep.mubr.f32.mxu0 0.0
      %432 = vmatmul.mubr.f32.gmra.mrb[0].mxu0 %v316
      %v433 = vpop.f32.mrb[0].mxu0
      %v434 = vadd.f32 %v350, %v433
      %v435 = vpop.f32.mrb[0].mxu0
      %436 = vmatprep.mubr.f32.mxu0 0.0
      %437 = vmatmul.mubr.f32.gmra.mrb[0].mxu0 %v317
      %v438 = vpop.f32.mrb[0].mxu0
      %v439 = vadd.f32 %v350, %v438
      %v440 = vpop.f32.mrb[0].mxu0
      %441 = vmatprep.mubr.f32.mxu0 0.0
      %442 = vmatmul.mubr.f32.gmra.mrb[0].mxu0 %v318
      %v443 = vpop.f32.mrb[0].mxu0
      %v444 = vadd.f32 %v350, %v443
      %v445 = vpop.f32.mrb[0].mxu0
      %446 = vmatprep.mubr.f32.mxu0 0.0
      %447 = vmatmul.mubr.f32.gmra.mrb[0].mxu0 %v319
      %v448 = vpop.f32.mrb[0].mxu0
      %v449 = vadd.f32 %v350, %v448
      %v450 = vpop.f32.mrb[0].mxu0
      %451 = vmatprep.mubr.f32.mxu0 0.0
      %452 = vmatmul.mubr.f32.gmra.mrb[0].mxu0 %v320
      %v453 = vpop.f32.mrb[0].mxu0
      %v454 = vadd.f32 %v350, %v453
      %v455 = vpop.f32.mrb[0].mxu0
      %456 = vmatprep.mubr.f32.mxu0 0.0
      %457 = vmatmul.mubr.f32.gmra.mrb[0].mxu0 %v321
      %v458 = vpop.f32.mrb[0].mxu0
      %v459 = vadd.f32 %v350, %v458
      %v460 = vpop.f32.mrb[0].mxu0
      %461 = vmatprep.mubr.f32.mxu0 0.0
      %462 = vmatmul.mubr.f32.gmra.mrb[0].mxu0 %v322
      %v463 = vpop.f32.mrb[0].mxu0
      %v464 = vadd.f32 %v350, %v463
      %v465 = vpop.f32.mrb[0].mxu0
      %466 = vmatprep.mubr.f32.mxu0 0.0
      %467 = vmatmul.mubr.f32.gmra.mrb[0].mxu0 %v323
      %v468 = vpop.f32.mrb[0].mxu0
      %v469 = vadd.f32 %v350, %v468
      %v470 = vpop.f32.mrb[0].mxu0
      %471 = vmatprep.mubr.f32.mxu0 0.0
      %472 = vmatmul.mubr.f32.gmra.mrb[0].mxu0 %v324
      %v473 = vpop.f32.mrb[0].mxu0
      %v474 = vadd.f32 %v350, %v473
      %v475 = vpop.f32.mrb[0].mxu0
      %476 = vmatprep.mubr.f32.mxu0 0.0
      %477 = vmatmul.mubr.f32.gmra.mrb[0].mxu0 %v325
      %v478 = vpop.f32.mrb[0].mxu0
      %v479 = vadd.f32 %v350, %v478
      %v480 = vpop.f32.mrb[0].mxu0
      %481 = vmatprep.mubr.f32.mxu0 0.0
      %482 = vmatmul.mubr.f32.gmra.mrb[0].mxu0 %v326
      %v483 = vpop.f32.mrb[0].mxu0
      %v484 = vadd.f32 %v350, %v483
      %v485 = vpop.f32.mrb[0].mxu0
      %486 = vmatprep.mubr.f32.mxu0 0.0
      %487 = vmatmul.mubr.f32.gmra.mrb[0].mxu0 %v327
      %v488 = vpop.f32.mrb[0].mxu0
      %v489 = vadd.f32 %v350, %v488
      %v490 = vpop.f32.mrb[0].mxu0
      %491 = vmatprep.mubr.f32.mxu0 0.0
      %492 = vmatmul.mubr.f32.gmra.mrb[0].mxu0 %v328
      %v493 = vpop.f32.mrb[0].mxu0
      %v494 = vadd.f32 %v350, %v493
      %v495 = vpop.f32.mrb[0].mxu0
      %496 = vdwg.mxu0
      %v497 = vrsqrt.pop %v419
      %v498 = vmul.f32 %v419, %v497
      %vm499 = vcmp.eq.f32.partialorder %v419, inf
      %v500 = vsel %vm499, %v419, %v498
      %vm501 = vcmp.eq.f32.partialorder %v419, 0.0
      %v502 = vand.u32 %v419, 2147483648
      %v503 = vsel %vm501, %v502, %v500
      %v504 = vrsqrt.pop %v424
      %v505 = vmul.f32 %v424, %v504
      %vm506 = vcmp.eq.f32.partialorder %v424, inf
      %v507 = vsel %vm506, %v424, %v505
      %vm508 = vcmp.eq.f32.partialorder %v424, 0.0
      %v509 = vand.u32 %v424, 2147483648
      %v510 = vsel %vm508, %v509, %v507
      %v511 = vrsqrt.pop %v429
      %v512 = vmul.f32 %v429, %v511
      %vm513 = vcmp.eq.f32.partialorder %v429, inf
      %v514 = vsel %vm513, %v429, %v512
      %vm515 = vcmp.eq.f32.partialorder %v429, 0.0
      %v516 = vand.u32 %v429, 2147483648
      %v517 = vsel %vm515, %v516, %v514
      %v518 = vrsqrt.pop %v434
      %v519 = vmul.f32 %v434, %v518
      %vm520 = vcmp.eq.f32.partialorder %v434, inf
      %v521 = vsel %vm520, %v434, %v519
      %vm522 = vcmp.eq.f32.partialorder %v434, 0.0
      %v523 = vand.u32 %v434, 2147483648
      %v524 = vsel %vm522, %v523, %v521
      %v525 = vrsqrt.pop %v439
      %v526 = vmul.f32 %v439, %v525
      %vm527 = vcmp.eq.f32.partialorder %v439, inf
      %v528 = vsel %vm527, %v439, %v526
      %vm529 = vcmp.eq.f32.partialorder %v439, 0.0
      %v530 = vand.u32 %v439, 2147483648
      %v531 = vsel %vm529, %v530, %v528
      %v532 = vrsqrt.pop %v444
      %v533 = vmul.f32 %v444, %v532
      %vm534 = vcmp.eq.f32.partialorder %v444, inf
      %v535 = vsel %vm534, %v444, %v533
      %vm536 = vcmp.eq.f32.partialorder %v444, 0.0
      %v537 = vand.u32 %v444, 2147483648
      %v538 = vsel %vm536, %v537, %v535
      %v539 = vrsqrt.pop %v449
      %v540 = vmul.f32 %v449, %v539
      %vm541 = vcmp.eq.f32.partialorder %v449, inf
      %v542 = vsel %vm541, %v449, %v540
      %vm543 = vcmp.eq.f32.partialorder %v449, 0.0
      %v544 = vand.u32 %v449, 2147483648
      %v545 = vsel %vm543, %v544, %v542
      %v546 = vrsqrt.pop %v454
      %v547 = vmul.f32 %v454, %v546
      %vm548 = vcmp.eq.f32.partialorder %v454, inf
      %v549 = vsel %vm548, %v454, %v547
      %vm550 = vcmp.eq.f32.partialorder %v454, 0.0
      %v551 = vand.u32 %v454, 2147483648
      %v552 = vsel %vm550, %v551, %v549
      %v553 = vrsqrt.pop %v459
      %v554 = vmul.f32 %v459, %v553
      %vm555 = vcmp.eq.f32.partialorder %v459, inf
      %v556 = vsel %vm555, %v459, %v554
      %vm557 = vcmp.eq.f32.partialorder %v459, 0.0
      %v558 = vand.u32 %v459, 2147483648
      %v559 = vsel %vm557, %v558, %v556
      %v560 = vrsqrt.pop %v464
      %v561 = vmul.f32 %v464, %v560
      %vm562 = vcmp.eq.f32.partialorder %v464, inf
      %v563 = vsel %vm562, %v464, %v561
      %vm564 = vcmp.eq.f32.partialorder %v464, 0.0
      %v565 = vand.u32 %v464, 2147483648
      %v566 = vsel %vm564, %v565, %v563
      %v567 = vrsqrt.pop %v469
      %v568 = vmul.f32 %v469, %v567
      %vm569 = vcmp.eq.f32.partialorder %v469, inf
      %v570 = vsel %vm569, %v469, %v568
      %vm571 = vcmp.eq.f32.partialorder %v469, 0.0
      %v572 = vand.u32 %v469, 2147483648
      %v573 = vsel %vm571, %v572, %v570
      %v574 = vrsqrt.pop %v474
      %v575 = vmul.f32 %v474, %v574
      %vm576 = vcmp.eq.f32.partialorder %v474, inf
      %v577 = vsel %vm576, %v474, %v575
      %vm578 = vcmp.eq.f32.partialorder %v474, 0.0
      %v579 = vand.u32 %v474, 2147483648
      %v580 = vsel %vm578, %v579, %v577
      %v581 = vrsqrt.pop %v479
      %v582 = vmul.f32 %v479, %v581
      %vm583 = vcmp.eq.f32.partialorder %v479, inf
      %v584 = vsel %vm583, %v479, %v582
      %vm585 = vcmp.eq.f32.partialorder %v479, 0.0
      %v586 = vand.u32 %v479, 2147483648
      %v587 = vsel %vm585, %v586, %v584
      %v588 = vrsqrt.pop %v484
      %v589 = vmul.f32 %v484, %v588
      %vm590 = vcmp.eq.f32.partialorder %v484, inf
      %v591 = vsel %vm590, %v484, %v589
      %vm592 = vcmp.eq.f32.partialorder %v484, 0.0
      %v593 = vand.u32 %v484, 2147483648
      %v594 = vsel %vm592, %v593, %v591
      %v595 = vrsqrt.pop %v489
      %v596 = vmul.f32 %v489, %v595
      %vm597 = vcmp.eq.f32.partialorder %v489, inf
      %v598 = vsel %vm597, %v489, %v596
      %vm599 = vcmp.eq.f32.partialorder %v489, 0.0
      %v600 = vand.u32 %v489, 2147483648
      %v601 = vsel %vm599, %v600, %v598
      %v602 = vrsqrt.pop %v494
      %v603 = vmul.f32 %v494, %v602
      %vm604 = vcmp.eq.f32.partialorder %v494, inf
      %v605 = vsel %vm604, %v494, %v603
      %vm606 = vcmp.eq.f32.partialorder %v494, 0.0
      %v607 = vand.u32 %v494, 2147483648
      %v608 = vsel %vm606, %v607, %v605
      %v609 = vld [vmem:[#allocation2] sm:$0x1]
      %v611 = vlaneseq
      %v612 = vshrl.u32 %v611, 7
      %v613 = vsub.s32 0, %v612
      %v614 = vrot.slane %v609, %v613
      %616 = vmatprep.subr.mxu0 0.0
      %617 = vmatpush1.msra.mxu0 %v297
      %618 = vmatprep.subr.mxu0 0.0
      %619 = vmatpush1.msra.mxu0 %v298
      %620 = vmatprep.subr.mxu0 0.0
      %621 = vmatpush1.msra.mxu0 %v299
      %622 = vmatprep.subr.mxu0 0.0
      %623 = vmatpush1.msra.mxu0 %v300
      %624 = vmatprep.subr.mxu0 0.0
      %625 = vmatpush1.msra.mxu0 %v301
      %626 = vmatprep.subr.mxu0 0.0
      %627 = vmatpush1.msra.mxu0 %v302
      %628 = vmatprep.subr.mxu0 0.0
      %629 = vmatpush1.msra.mxu0 %v303
      %630 = vmatprep.subr.mxu0 0.0
      %631 = vmatpush1.msra.mxu0 %v304
      %632 = vmatprep.subr.mxu0 0.0
      %633 = vmatpush1.msra.mxu0 %v305
      %634 = vmatprep.subr.mxu0 0.0
      %635 = vmatpush1.msra.mxu0 %v306
      %636 = vmatprep.subr.mxu0 0.0
      %637 = vmatpush1.msra.mxu0 %v307
      %638 = vmatprep.subr.mxu0 0.0
      %639 = vmatpush1.msra.mxu0 %v308
      %640 = vmatprep.subr.mxu0 0.0
      %641 = vmatpush1.msra.mxu0 %v309
      %642 = vmatprep.subr.mxu0 0.0
      %643 = vmatpush1.msra.mxu0 %v310
      %644 = vmatprep.subr.mxu0 0.0
      %645 = vmatpush1.msra.mxu0 %v311
      %646 = vmatprep.subr.mxu0 0.0
      %647 = vmatpush1.msra.mxu0 %v312
      %648 = vmatprep.subr.mxu0 0.0
      %649 = vmatpush1.msra.mxu0 0.0
      %650 = vmatprep.subr.mxu0 0.0
      %651 = vmatpush1.msra.mxu0 0.0
      %652 = vmatprep.subr.mxu0 0.0
      %653 = vmatpush1.msra.mxu0 0.0
      %654 = vmatprep.subr.mxu0 0.0
      %655 = vmatpush1.msra.mxu0 0.0
      %656 = vmatprep.subr.mxu0 0.0
      %657 = vmatpush1.msra.mxu0 0.0
      %658 = vmatprep.subr.mxu0 0.0
      %659 = vmatpush1.msra.mxu0 0.0
      %660 = vmatprep.subr.mxu0 0.0
      %661 = vmatpush1.msra.mxu0 0.0
      %662 = vmatprep.subr.mxu0 0.0
      %663 = vmatpush1.msra.mxu0 0.0
      %664 = vmatprep.subr.mxu0 0.0
      %665 = vmatpush1.msra.mxu0 0.0
      %666 = vmatprep.subr.mxu0 0.0
      %667 = vmatpush1.msra.mxu0 0.0
      %668 = vmatprep.subr.mxu0 0.0
      %669 = vmatpush1.msra.mxu0 0.0
      %670 = vmatprep.subr.mxu0 0.0
      %671 = vmatpush1.msra.mxu0 0.0
      %672 = vmatprep.subr.mxu0 0.0
      %673 = vmatpush1.msra.mxu0 0.0
      %674 = vmatprep.subr.mxu0 0.0
      %675 = vmatpush1.msra.mxu0 0.0
      %676 = vmatprep.subr.mxu0 0.0
      %677 = vmatpush1.msra.mxu0 0.0
      %678 = vmatprep.subr.mxu0 0.0
      %679 = vmatpush1.msra.mxu0 0.0
      %680 = vmatprep.mubr.f32.mxu0 0.0
      %681 = vmatmul.mubr.f32.gmra.mrb[0].mxu0 %v281
      %v682 = vpop.f32.mrb[0].mxu0
      %v683 = vadd.f32 %v614, %v682
      %v684 = vpop.f32.mrb[0].mxu0
      %685 = vmatprep.mubr.f32.mxu0 0.0
      %686 = vmatmul.mubr.f32.gmra.mrb[0].mxu0 %v282
      %v687 = vpop.f32.mrb[0].mxu0
      %v688 = vadd.f32 %v614, %v687
      %v689 = vpop.f32.mrb[0].mxu0
      %690 = vmatprep.mubr.f32.mxu0 0.0
      %691 = vmatmul.mubr.f32.gmra.mrb[0].mxu0 %v283
      %v692 = vpop.f32.mrb[0].mxu0
      %v693 = vadd.f32 %v614, %v692
      %v694 = vpop.f32.mrb[0].mxu0
      %695 = vmatprep.mubr.f32.mxu0 0.0
      %696 = vmatmul.mubr.f32.gmra.mrb[0].mxu0 %v284
      %v697 = vpop.f32.mrb[0].mxu0
      %v698 = vadd.f32 %v614, %v697
      %v699 = vpop.f32.mrb[0].mxu0
      %700 = vmatprep.mubr.f32.mxu0 0.0
      %701 = vmatmul.mubr.f32.gmra.mrb[0].mxu0 %v285
      %v702 = vpop.f32.mrb[0].mxu0
      %v703 = vadd.f32 %v614, %v702
      %v704 = vpop.f32.mrb[0].mxu0
      %705 = vmatprep.mubr.f32.mxu0 0.0
      %706 = vmatmul.mubr.f32.gmra.mrb[0].mxu0 %v286
      %v707 = vpop.f32.mrb[0].mxu0
      %v708 = vadd.f32 %v614, %v707
      %v709 = vpop.f32.mrb[0].mxu0
      %710 = vmatprep.mubr.f32.mxu0 0.0
      %711 = vmatmul.mubr.f32.gmra.mrb[0].mxu0 %v287
      %v712 = vpop.f32.mrb[0].mxu0
      %v713 = vadd.f32 %v614, %v712
      %v714 = vpop.f32.mrb[0].mxu0
      %715 = vmatprep.mubr.f32.mxu0 0.0
      %716 = vmatmul.mubr.f32.gmra.mrb[0].mxu0 %v288
      %v717 = vpop.f32.mrb[0].mxu0
      %v718 = vadd.f32 %v614, %v717
      %v719 = vpop.f32.mrb[0].mxu0
      %720 = vmatprep.mubr.f32.mxu0 0.0
      %721 = vmatmul.mubr.f32.gmra.mrb[0].mxu0 %v289
      %v722 = vpop.f32.mrb[0].mxu0
      %v723 = vadd.f32 %v614, %v722
      %v724 = vpop.f32.mrb[0].mxu0
      %725 = vmatprep.mubr.f32.mxu0 0.0
      %726 = vmatmul.mubr.f32.gmra.mrb[0].mxu0 %v290
      %v727 = vpop.f32.mrb[0].mxu0
      %v728 = vadd.f32 %v614, %v727
      %v729 = vpop.f32.mrb[0].mxu0
      %730 = vmatprep.mubr.f32.mxu0 0.0
      %731 = vmatmul.mubr.f32.gmra.mrb[0].mxu0 %v291
      %v732 = vpop.f32.mrb[0].mxu0
      %v733 = vadd.f32 %v614, %v732
      %v734 = vpop.f32.mrb[0].mxu0
      %735 = vmatprep.mubr.f32.mxu0 0.0
      %736 = vmatmul.mubr.f32.gmra.mrb[0].mxu0 %v292
      %v737 = vpop.f32.mrb[0].mxu0
      %v738 = vadd.f32 %v614, %v737
      %v739 = vpop.f32.mrb[0].mxu0
      %740 = vmatprep.mubr.f32.mxu0 0.0
      %741 = vmatmul.mubr.f32.gmra.mrb[0].mxu0 %v293
      %v742 = vpop.f32.mrb[0].mxu0
      %v743 = vadd.f32 %v614, %v742
      %v744 = vpop.f32.mrb[0].mxu0
      %745 = vmatprep.mubr.f32.mxu0 0.0
      %746 = vmatmul.mubr.f32.gmra.mrb[0].mxu0 %v294
      %v747 = vpop.f32.mrb[0].mxu0
      %v748 = vadd.f32 %v614, %v747
      %v749 = vpop.f32.mrb[0].mxu0
      %750 = vmatprep.mubr.f32.mxu0 0.0
      %751 = vmatmul.mubr.f32.gmra.mrb[0].mxu0 %v295
      %v752 = vpop.f32.mrb[0].mxu0
      %v753 = vadd.f32 %v614, %v752
      %v754 = vpop.f32.mrb[0].mxu0
      %755 = vmatprep.mubr.f32.mxu0 0.0
      %756 = vmatmul.mubr.f32.gmra.mrb[0].mxu0 %v296
      %v757 = vpop.f32.mrb[0].mxu0
      %v758 = vadd.f32 %v614, %v757
      %v759 = vpop.f32.mrb[0].mxu0
      %760 = vdwg.mxu0
      %v761 = vld [vmem:[%s273] sm:$0xff]
      %v762 = vld [vmem:[%s273 + $0x8] sm:$0xff]
      %v763 = vld [vmem:[%s273 + $0x10] sm:$0xff]
      %v764 = vld [vmem:[%s273 + $0x18] sm:$0xff]
      %v765 = vld [vmem:[%s273 + $0x20] sm:$0xff]
      %v766 = vld [vmem:[%s273 + $0x28] sm:$0xff]
      %v767 = vld [vmem:[%s273 + $0x30] sm:$0xff]
      %v768 = vld [vmem:[%s273 + $0x38] sm:$0xff]
      %v769 = vld [vmem:[%s273 + $0x40] sm:$0xff]
      %v770 = vld [vmem:[%s273 + $0x48] sm:$0xff]
      %v771 = vld [vmem:[%s273 + $0x50] sm:$0xff]
      %v772 = vld [vmem:[%s273 + $0x58] sm:$0xff]
      %v773 = vld [vmem:[%s273 + $0x60] sm:$0xff]
      %v774 = vld [vmem:[%s273 + $0x68] sm:$0xff]
      %v775 = vld [vmem:[%s273 + $0x70] sm:$0xff]
      %v776 = vld [vmem:[%s273 + $0x78] sm:$0xff]
      %v777 = vmul.f32 %v503, %v761
      %v778 = vmul.f32 %v510, %v762
      %v779 = vmul.f32 %v517, %v763
      %v780 = vmul.f32 %v524, %v764
      %v781 = vmul.f32 %v531, %v765
      %v782 = vmul.f32 %v538, %v766
      %v783 = vmul.f32 %v545, %v767
      %v784 = vmul.f32 %v552, %v768
      %v785 = vmul.f32 %v559, %v769
      %v786 = vmul.f32 %v566, %v770
      %v787 = vmul.f32 %v573, %v771
      %v788 = vmul.f32 %v580, %v772
      %v789 = vmul.f32 %v587, %v773
      %v790 = vmul.f32 %v594, %v774
      %v791 = vmul.f32 %v601, %v775
      %v792 = vmul.f32 %v608, %v776
      %v793 = vadd.f32 %v683, %v777
      %v794 = vadd.f32 %v688, %v778
      %v795 = vadd.f32 %v693, %v779
      %v796 = vadd.f32 %v698, %v780
      %v797 = vadd.f32 %v703, %v781
      %v798 = vadd.f32 %v708, %v782
      %v799 = vadd.f32 %v713, %v783
      %v800 = vadd.f32 %v718, %v784
      %v801 = vadd.f32 %v723, %v785
      %v802 = vadd.f32 %v728, %v786
      %v803 = vadd.f32 %v733, %v787
      %v804 = vadd.f32 %v738, %v788
      %v805 = vadd.f32 %v743, %v789
      %v806 = vadd.f32 %v748, %v790
      %v807 = vadd.f32 %v753, %v791
      %v808 = vadd.f32 %v758, %v792
      %vm809 = vcmask 7168
      %810 = vst.msk [vmem:[%s279] sm:$0xff] %vm809, %v793
      %811 = vst.msk [vmem:[%s279 + $0x8] sm:$0xff] %vm809, %v794
      %812 = vst.msk [vmem:[%s279 + $0x10] sm:$0xff] %vm809, %v795
      %813 = vst.msk [vmem:[%s279 + $0x18] sm:$0xff] %vm809, %v796
      %814 = vst.msk [vmem:[%s279 + $0x20] sm:$0xff] %vm809, %v797
      %815 = vst.msk [vmem:[%s279 + $0x28] sm:$0xff] %vm809, %v798
      %816 = vst.msk [vmem:[%s279 + $0x30] sm:$0xff] %vm809, %v799
      %817 = vst.msk [vmem:[%s279 + $0x38] sm:$0xff] %vm809, %v800
      %818 = vst.msk [vmem:[%s279 + $0x40] sm:$0xff] %vm809, %v801
      %819 = vst.msk [vmem:[%s279 + $0x48] sm:$0xff] %vm809, %v802
      %820 = vst.msk [vmem:[%s279 + $0x50] sm:$0xff] %vm809, %v803
      %821 = vst.msk [vmem:[%s279 + $0x58] sm:$0xff] %vm809, %v804
      %822 = vst.msk [vmem:[%s279 + $0x60] sm:$0xff] %vm809, %v805
      %823 = vst.msk [vmem:[%s279 + $0x68] sm:$0xff] %vm809, %v806
      %824 = vst.msk [vmem:[%s279 + $0x70] sm:$0xff] %vm809, %v807
      %825 = vst.msk [vmem:[%s279 + $0x78] sm:$0xff] %vm809, %v808
      %s826 = smul.u32 16, %s21
      %p827 = scmp.lt.s32.totalorder %s826, 31
      %s828 = scalar_select %p827, %s826, 31
      %s829 = smul.addr %s828, 8
      %s830 = scalar_lea.vmem %s6, %s829
      // Predicated region
      $region45: #{tpu_custom_call.1} parent=43 // pred_check
        %p831 = pneg %p175
      $region46: #{tpu_custom_call.1} parent=43 // pred_check_branch
        %833 = sbr.rel (%p831) target = $region48
      $region47: #{tpu_custom_call.1} parent=43 // pred_region
        %s834 = smul.u32 16, %s21
      $region48: #{tpu_custom_call.1} parent=43 // pred_fallthru
        _
    $region44: #{tpu_custom_call.1} parent=5 // pred_fallthru
      _
    %p835 = scmp.le.s32.totalorder 2, %s16
    // Predicated region
    $region49: #{tpu_custom_call.1} parent=5 // pred_check
      %p836 = pneg %p835
    $region50: #{tpu_custom_call.1} parent=5 // pred_check_branch
      %838 = sbr.rel (%p836) target = $region52
    $region51: #{tpu_custom_call.1} parent=5 // pred_region
      %s839 = ssub.s32 %s16, 2
      // Predicated region
      $region53: #{tpu_custom_call.1} parent=51 // pred_check
        %p840 = pneg %p181
      $region54: #{tpu_custom_call.1} parent=51 // pred_check_branch
        %842 = sbr.rel (%p840) target = $region56
      $region55: #{tpu_custom_call.1} parent=51 // pred_region
        %s843 = smul.u32 16, %s22
        %p844 = scmp.lt.s32.totalorder %s843, 31
        %s845 = scalar_select %p844, %s843, 31
        %s846 = smul.addr %s845, 8
        %s847 = scalar_lea.vmem %s6, %s846
      $region56: #{tpu_custom_call.1} parent=51 // pred_fallthru
        _
    $region52: #{tpu_custom_call.1} parent=5 // pred_fallthru
      _
  $region6: #{tpu_custom_call.1} parent=0 // loop_footer
    %s20 = sadd.s32 1, %s16
  $region7: #{tpu_custom_call.1} parent=0 // loop_footer_branch
    %15 = sbr.rel target = $region3
  $region8: #{tpu_custom_call.1} parent=0 // loop_exit
    _

</llo_original>
